<compile_context>
chip_gen: v6e
topology: v6e:2x2x1
jax: 0.10.0
libtpu: 0.0.40
codegen_flags: <defaults>
</compile_context>

<pallas_src>
import functools

import numpy as np
import jax
import jax.numpy as jnp
from jax import lax
from jax.experimental import pallas as pl
from jax.experimental.pallas import tpu as pltpu


# ----------------------------- phase 1: mask -------------------------------
def _mask_kernel(gamma_ref, u_ref, band_h_ref, band_w_ref, keep_ref, *, pad):
    """Compute the scaled keep mask.

    gamma_ref  : SMEM float32[1]  -- per-position center-drop probability
    u_ref      : VMEM (N, H, W)   -- uniform(0,1) noise, shared across channels
    band_h_ref : VMEM (H, H)      -- banded ones, |i-j| <= pad
    band_w_ref : VMEM (W, W)      -- banded ones, |i-j| <= pad
    keep_ref   : VMEM (N, H, W)   -- output: keep mask * global scale
    """
    N, H, W = u_ref.shape
    gamma = gamma_ref[0]

    # Bernoulli block centers, restricted to positions where the full block
    # fits inside the feature map.
    centers = (u_ref[...] < gamma).astype(jnp.float32)
    row = lax.broadcasted_iota(jnp.int32, (N, H, W), 1)
    col = lax.broadcasted_iota(jnp.int32, (N, H, W), 2)
    valid = ((row >= pad) & (row <= H - 1 - pad) &
             (col >= pad) & (col <= W - 1 - pad))
    centers = jnp.where(valid, centers, jnp.float32(0.0))

    # Block dilation (stride-1 max-pool of 0/1 centers) as one batched pair of
    # banded-ones contractions: S = band_h @ centers @ band_w ; a pixel is
    # dropped iff S > 0 (some center lies inside its block window).
    bh = jnp.broadcast_to(band_h_ref[...], (N, H, H))
    bw = jnp.broadcast_to(band_w_ref[...], (N, W, W))
    s = jnp.einsum('nhk,nkw->nhw', bh, centers,
                   preferred_element_type=jnp.float32)
    s = jnp.einsum('nhw,nwv->nhv', s, bw,
                   preferred_element_type=jnp.float32)
    keep = (s < jnp.float32(0.5)).astype(jnp.float32)  # 1 = keep

    # Global re-normalization folded directly into the mask (no scalar
    # plumbing between the two pallas_calls).
    kept = jnp.sum(keep)
    total = jnp.float32(N * H * W)
    scale = total / jnp.maximum(kept, jnp.float32(1.0))
    keep_ref[...] = keep * scale


# --------------------------- phase 2: apply ---------------------------------
def _apply_kernel(keep_ref, x_ref, o_ref):
    """Lane-dense masked multiply.

    keep_ref : VMEM (1, 1, hw_tile)      -- scaled keep mask row for sample n
    x_ref    : VMEM (1, c_tile, hw_tile)
    o_ref    : VMEM (1, c_tile, hw_tile)
    """
    o_ref[...] = (x_ref[...] * keep_ref[...]).astype(o_ref.dtype)


def _largest_aligned_divisor(dim, align, max_tile):
    """Largest divisor of `dim` that is a multiple of `align` and <= max_tile.

    Falls back to the full extent when no aligned divisor exists (the full
    extent is always a legal block dim).
    """
    if dim % align != 0:
        return dim
    best = align
    for t in range(align, min(dim, max_tile) + 1, align):
        if dim % t == 0:
            best = t
    return best


@functools.partial(jax.jit, static_argnames=("block_size",))
def _dropblock_apply(x, u, gamma_arr, band_h, band_w, *, block_size):
    N, C, H, W = x.shape
    HW = H * W
    pad = block_size // 2

    # ---- phase 1: tiny mask kernel (single grid point, everything fits) ----
    keep = pl.pallas_call(
        functools.partial(_mask_kernel, pad=pad),
        out_shape=jax.ShapeDtypeStruct((N, H, W), jnp.float32),
        in_specs=[
            pl.BlockSpec(memory_space=pltpu.MemorySpace.SMEM),   # gamma
            pl.BlockSpec(memory_space=pltpu.MemorySpace.VMEM),   # noise
            pl.BlockSpec(memory_space=pltpu.MemorySpace.VMEM),   # band_h
            pl.BlockSpec(memory_space=pltpu.MemorySpace.VMEM),   # band_w
        ],
        out_specs=pl.BlockSpec(memory_space=pltpu.MemorySpace.VMEM),
    )(gamma_arr, u, band_h, band_w)

    # ---- phase 2: lane-dense tiled multiply (grid over N / C / H*W) --------
    # Present x and the output with H*W on the lane axis so stores are
    # unmasked full-lane vst's, and tile so the kernel scales to big feature
    # maps on v7x's smaller VMEM.
    keep3 = keep.reshape(N, 1, HW)
    x3 = x.reshape(N, C, HW)

    itemsize = jnp.dtype(x.dtype).itemsize
    hw_tile = _largest_aligned_divisor(HW, 128, 4096)
    max_c = max(8, (2 * 1024 * 1024) // max(hw_tile * itemsize, 1))
    c_tile = _largest_aligned_divisor(C, 8, max_c)
    grid = (N, C // c_tile, HW // hw_tile)

    # TODO(synk): could pass input_output_aliases={1: 0} (x aliased to out)
    # when the caller donates x; left off to keep the wrapper side-effect free.
    out3 = pl.pallas_call(
        _apply_kernel,
        out_shape=jax.ShapeDtypeStruct((N, C, HW), x.dtype),
        grid=grid,
        in_specs=[
            pl.BlockSpec((1, 1, hw_tile), lambda n, c, w: (n, 0, w)),
            pl.BlockSpec((1, c_tile, hw_tile), lambda n, c, w: (n, c, w)),
        ],
        out_specs=pl.BlockSpec((1, c_tile, hw_tile), lambda n, c, w: (n, c, w)),
        compiler_params=pltpu.CompilerParams(
            dimension_semantics=("parallel", "parallel", "parallel")),
    )(keep3, x3)

    return out3.reshape(N, C, H, W)


# ------------------------------ host wrappers -------------------------------
class DropBlock2D:
    """Stand-in for the PyTorch `dropBlock` module wrapped by probScheduler."""

    def __init__(self, prob, block_size):
        self.prob = float(prob)
        self.block_size = int(block_size)   # NOTE: faithful for odd block_size

    def __call__(self, x, seed):
        N, C, H, W = x.shape
        bs = self.block_size
        pad = bs // 2
        # DropBlock paper gamma: corrects for the valid-center sampling region.
        gamma = (float(self.prob) / (bs * bs)) * (
            (H * W) / max((H - bs + 1) * (W - bs + 1), 1))
        gamma_arr = jnp.asarray([gamma], dtype=jnp.float32)

        # TODO(synk): in-kernel pltpu.prng_seed/prng_random_bits would avoid
        # materializing the noise array, but those primitives have no
        # CPU/interpret lowering, so noise is generated host-side with
        # jax.random and streamed into the mask kernel.
        key = jax.random.PRNGKey(int(seed))
        u = jax.random.uniform(key, (N, H, W), dtype=jnp.float32)

        # Banded-ones matrices for the dilation (hoisted out of the kernel).
        ih = np.arange(H)
        iw = np.arange(W)
        band_h = jnp.asarray(
            (np.abs(ih[:, None] - ih[None, :]) <= pad).astype(np.float32))
        band_w = jnp.asarray(
            (np.abs(iw[:, None] - iw[None, :]) <= pad).astype(np.float32))

        return _dropblock_apply(x, u, gamma_arr, band_h, band_w, block_size=bs)


class ProbScheduler:
    """JAX/Pallas equivalent of the PyTorch probScheduler module."""

    def __init__(self, drop_block, start_prob, end_prob, iteration):
        self.drop_block = drop_block
        self.i = 0
        # TODO(synk): schedule bookkeeping stays host-side Python state (like
        # the PyTorch module's self.i / numpy linspace); it is not device code.
        self.prob_schedule = np.linspace(start_prob, end_prob, iteration)

    def __call__(self, x, seed):
        out = self.drop_block(x, seed)   # uses the CURRENT prob
        self.step()                      # then advance the schedule
        return out

    def step(self):
        if self.i < len(self.prob_schedule):
            self.drop_block.prob = float(self.prob_schedule[self.i])
        self.i += 1


if __name__ == "__main__":
    key = jax.random.PRNGKey(0)
    N, C, H, W = 2, 4, 16, 16
    x = jax.random.normal(key, (N, C, H, W), dtype=jnp.float32)

    drop_block = DropBlock2D(prob=0.0, block_size=3)
    sched = ProbScheduler(drop_block, start_prob=0.1, end_prob=0.5, iteration=4)

    # First call uses the initial prob (0.0) -> must be an exact pass-through.
    out0 = sched(x, seed=0)
    jax.block_until_ready(out0)
    assert out0.shape == x.shape and out0.dtype == x.dtype
    assert jnp.allclose(out0, x, atol=1e-5), "prob=0 forward must be identity"

    # Subsequent calls use the scheduled (increasing) drop probabilities.
    out = out0
    for step in range(1, 5):
        out = sched(x, seed=step)
    jax.block_until_ready(out)
    assert bool(jnp.all(jnp.isfinite(out)))

    print("KERNEL_OK")
</pallas_src>

<mosaic_0001>
module attributes {stable_mosaic.version = 11 : i64} {
  func.func @_mask_kernel(%arg0: memref<1xf32, #tpu.memory_space<smem>>, %arg1: memref<2x16x16xf32, #tpu.memory_space<vmem>>, %arg2: memref<16x16xf32, #tpu.memory_space<vmem>>, %arg3: memref<16x16xf32, #tpu.memory_space<vmem>>, %arg4: memref<2x16x16xf32, #tpu.memory_space<vmem>>) attributes {dimension_semantics = [], scalar_prefetch = 0 : i64, scratch_operands = 0 : i64, tpu.core_type = #tpu.core_type<tc>} {
    %c0 = arith.constant 0 : index
    %0 = memref.load %arg0[%c0] : memref<1xf32, #tpu.memory_space<smem>>
    %c0_0 = arith.constant 0 : index
    %c0_1 = arith.constant 0 : index
    %c0_2 = arith.constant 0 : index
    %1 = vector.load %arg1[%c0_0, %c0_1, %c0_2] : memref<2x16x16xf32, #tpu.memory_space<vmem>>, vector<2x16x16xf32>
    %2 = vector.broadcast %0 : f32 to vector<2x16x16xf32>
    %3 = arith.cmpf olt, %1, %2 : vector<2x16x16xf32>
    %4 = arith.extui %3 : vector<2x16x16xi1> to vector<2x16x16xi32>
    %5 = arith.sitofp %4 : vector<2x16x16xi32> to vector<2x16x16xf32>
    %6 = tpu.iota {dimensions = array<i32: 1>} : vector<2x16x16xi32>
    %7 = tpu.iota {dimensions = array<i32: 2>} : vector<2x16x16xi32>
    %c1_i32 = arith.constant 1 : i32
    %8 = vector.broadcast %c1_i32 : i32 to vector<2x16x16xi32>
    %9 = arith.cmpi sge, %6, %8 : vector<2x16x16xi32>
    %c14_i32 = arith.constant 14 : i32
    %10 = vector.broadcast %c14_i32 : i32 to vector<2x16x16xi32>
    %11 = arith.cmpi sle, %6, %10 : vector<2x16x16xi32>
    %12 = arith.andi %9, %11 : vector<2x16x16xi1>
    %c1_i32_3 = arith.constant 1 : i32
    %13 = vector.broadcast %c1_i32_3 : i32 to vector<2x16x16xi32>
    %14 = arith.cmpi sge, %7, %13 : vector<2x16x16xi32>
    %15 = arith.andi %12, %14 : vector<2x16x16xi1>
    %c14_i32_4 = arith.constant 14 : i32
    %16 = vector.broadcast %c14_i32_4 : i32 to vector<2x16x16xi32>
    %17 = arith.cmpi sle, %7, %16 : vector<2x16x16xi32>
    %18 = arith.andi %15, %17 : vector<2x16x16xi1>
    %cst = arith.constant 0.000000e+00 : f32
    %19 = vector.broadcast %cst : f32 to vector<2x16x16xf32>
    %20 = arith.select %18, %5, %19 : vector<2x16x16xi1>, vector<2x16x16xf32>
    %c0_5 = arith.constant 0 : index
    %c0_6 = arith.constant 0 : index
    %21 = vector.load %arg2[%c0_5, %c0_6] : memref<16x16xf32, #tpu.memory_space<vmem>>, vector<16x16xf32>
    %22 = vector.shape_cast %21 : vector<16x16xf32> to vector<1x16x16xf32>
    %23 = vector.broadcast %22 : vector<1x16x16xf32> to vector<2x16x16xf32>
    %c0_7 = arith.constant 0 : index
    %c0_8 = arith.constant 0 : index
    %24 = vector.load %arg3[%c0_7, %c0_8] : memref<16x16xf32, #tpu.memory_space<vmem>>, vector<16x16xf32>
    %25 = vector.shape_cast %24 : vector<16x16xf32> to vector<1x16x16xf32>
    %26 = vector.broadcast %25 : vector<1x16x16xf32> to vector<2x16x16xf32>
    "tpu.trace_start"() <{level = 10 : i32, message = "nhk,nkw->nhw"}> : () -> ()
    %cst_9 = arith.constant dense<0.000000e+00> : vector<2x16x16xf32>
    %27 = tpu.matmul %23, %20, %cst_9 {dimension_numbers = #tpu.dot_dimension_numbers<[2], [1], [1], [2], [0, 0, 0, 1, 1, 2], [0], [0]>} : vector<2x16x16xf32>, vector<2x16x16xf32>, vector<2x16x16xf32> -> vector<2x16x16xf32>
    "tpu.trace_stop"() : () -> ()
    "tpu.trace_start"() <{level = 10 : i32, message = "nhw,nwv->nhv"}> : () -> ()
    %cst_10 = arith.constant dense<0.000000e+00> : vector<2x16x16xf32>
    %28 = tpu.matmul %27, %26, %cst_10 {dimension_numbers = #tpu.dot_dimension_numbers<[2], [1], [1], [2], [0, 0, 0, 1, 1, 2], [0], [0]>} : vector<2x16x16xf32>, vector<2x16x16xf32>, vector<2x16x16xf32> -> vector<2x16x16xf32>
    %cst_11 = arith.constant 5.000000e-01 : f32
    "tpu.trace_stop"() : () -> ()
    %29 = vector.broadcast %cst_11 : f32 to vector<2x16x16xf32>
    %30 = arith.cmpf olt, %28, %29 : vector<2x16x16xf32>
    %31 = arith.extui %30 : vector<2x16x16xi1> to vector<2x16x16xi32>
    %32 = arith.sitofp %31 : vector<2x16x16xi32> to vector<2x16x16xf32>
    %33 = vector.shape_cast %32 : vector<2x16x16xf32> to vector<1x2x16x16xf32>
    %cst_12 = arith.constant dense<0.000000e+00> : vector<1xf32>
    %34 = vector.multi_reduction <add>, %33, %cst_12 [1, 2, 3] : vector<1x2x16x16xf32> to vector<1xf32>
    %35 = vector.shape_cast %34 : vector<1xf32> to vector<1x1x1x1xf32>
    %36 = vector.extract %35[0, 0, 0, 0] : f32 from vector<1x1x1x1xf32>
    %cst_13 = arith.constant 1.000000e+00 : f32
    %37 = arith.maximumf %36, %cst_13 : f32
    %cst_14 = arith.constant 5.120000e+02 : f32
    %38 = arith.divf %cst_14, %37 : f32
    %39 = vector.broadcast %38 : f32 to vector<2x16x16xf32>
    %40 = arith.mulf %32, %39 : vector<2x16x16xf32>
    %c0_15 = arith.constant 0 : index
    %c0_16 = arith.constant 0 : index
    %c0_17 = arith.constant 0 : index
    %41 = vector.load %arg4[%c0_15, %c0_16, %c0_17] : memref<2x16x16xf32, #tpu.memory_space<vmem>>, vector<2x16x16xf32>
    tpu.vector_store %arg4[%c0_15, %c0_16, %c0_17], %40 {strides = array<i32>} : memref<2x16x16xf32, #tpu.memory_space<vmem>>, vector<2x16x16xf32>,
    return
  }
}

module attributes {stable_mosaic.version = 11 : i64} {
  func.func @_apply_kernel(%arg0: i32, %arg1: i32, %arg2: i32, %arg3: memref<1x1x256xf32, #tpu.memory_space<vmem>>, %arg4: memref<1x4x256xf32, #tpu.memory_space<vmem>>, %arg5: memref<1x4x256xf32, #tpu.memory_space<vmem>>) attributes {dimension_semantics = [#tpu.dimension_semantics<parallel>, #tpu.dimension_semantics<parallel>, #tpu.dimension_semantics<parallel>], iteration_bounds = array<i64: 2, 1, 1>, scalar_prefetch = 0 : i64, scratch_operands = 0 : i64, tpu.core_type = #tpu.core_type<tc>, window_params = [{transform_indices = @transform_0, window_bounds = array<i64: 1, 1, 256>}, {transform_indices = @transform_1, window_bounds = array<i64: 1, 4, 256>}, {transform_indices = @transform_2, window_bounds = array<i64: 1, 4, 256>}]} {
    %c0 = arith.constant 0 : index
    %c0_0 = arith.constant 0 : index
    %c0_1 = arith.constant 0 : index
    %0 = vector.load %arg4[%c0, %c0_0, %c0_1] : memref<1x4x256xf32, #tpu.memory_space<vmem>>, vector<1x4x256xf32>
    %c0_2 = arith.constant 0 : index
    %c0_3 = arith.constant 0 : index
    %c0_4 = arith.constant 0 : index
    %1 = vector.load %arg3[%c0_2, %c0_3, %c0_4] : memref<1x1x256xf32, #tpu.memory_space<vmem>>, vector<1x1x256xf32>
    %2 = vector.broadcast %1 : vector<1x1x256xf32> to vector<1x4x256xf32>
    %3 = arith.mulf %0, %2 : vector<1x4x256xf32>
    %c0_5 = arith.constant 0 : index
    %c0_6 = arith.constant 0 : index
    %c0_7 = arith.constant 0 : index
    %4 = vector.load %arg5[%c0_5, %c0_6, %c0_7] : memref<1x4x256xf32, #tpu.memory_space<vmem>>, vector<1x4x256xf32>
    tpu.vector_store %arg5[%c0_5, %c0_6, %c0_7], %3 {strides = array<i32>} : memref<1x4x256xf32, #tpu.memory_space<vmem>>, vector<1x4x256xf32>,
    return
  }
  func.func @transform_0(%arg0: i32, %arg1: i32, %arg2: i32) -> (i32, i32, i32) {
    %c0_i32 = arith.constant 0 : i32
    %c0_i32_0 = arith.constant 0 : i32
    return %arg0, %c0_i32, %arg2 : i32, i32, i32
  }
  func.func @transform_1(%arg0: i32, %arg1: i32, %arg2: i32) -> (i32, i32, i32) {
    %c0_i32 = arith.constant 0 : i32
    return %arg0, %arg1, %arg2 : i32, i32, i32
  }
  func.func @transform_2(%arg0: i32, %arg1: i32, %arg2: i32) -> (i32, i32, i32) {
    %c0_i32 = arith.constant 0 : i32
    return %arg0, %arg1, %arg2 : i32, i32, i32
  }
}

</mosaic_0001>

<llo_original>
// kernel: _dropblock_apply.3
$region0: #{_dropblock_apply.3}
  #allocation0 [shape = 'u32[]', space=smem, size = 0x4, offset = 0x4, fixed_abs, tag = 'smem constant byte address 0x4 - core index']
  #allocation1 [shape = 'u32[144,128]{1,0:T(1,128)}', space=vmem, size = 0x12000, scoped, tag = 'internal scratch']
  %s0 = inlined_call_operand.vmem [shape: f32[2,1,256], index: 0, kind: input, shape index: {}]
  %s1 = inlined_call_operand.vmem [shape: f32[2,4,256], index: 1, kind: input, shape index: {}]
  %s2 = inlined_call_operand.vmem [shape: f32[2,4,256], index: 2, kind: output, shape index: {}]
  %s3 = sld [smem:[#allocation0]]
  $region41: #{_dropblock_apply.3} parent=0
    _
  %s5 = ssub.s32 1, %s3
  %s6 = scalar_select 0, %s5, %s3
  loop: start=0, step=1, limit=4
  $region2: #{_dropblock_apply.3} parent=0 // loop_pre_header
    _
  $region3: #{_dropblock_apply.3} parent=0 // loop_header
    %s8 = sphi 0, %s12
    %p9 = scmp.ge.s32.totalorder %s8, 4
    %s15 = sphi 0, %s34
    %s16 = sphi 0, %s30
    %s17 = sphi 0, %s26
    %s18 = sphi 0, %s15
    %s19 = sphi 0, %s16
    %s20 = sphi 0, %s17
    %s21 = sphi 0, %s18
    %s22 = sphi 0, %s19
    %s23 = sphi 0, %s20
    %s39 = sphi 0, %s41
    %s42 = sphi 0, %s39
    %s43 = sphi 0, %s42
    %s59 = sphi 0, %s43
    %s69 = sphi 0, %s71
    %s72 = sphi 0, %s69
    %s73 = sphi 0, %s72
    %s89 = sphi 0, %s73
    %s99 = sphi 0, %s101
    %s102 = sphi 0, %s99
    %s103 = sphi 0, %s102
    %s119 = sphi 0, %s103
  $region4: #{_dropblock_apply.3} parent=0 // loop_header_branch
    %11 = sbr.rel (%p9) target = $region8
  $region5: #{_dropblock_apply.3} parent=0 // loop_body
    %s13 = ssub.s32 %s8, 1
    %s14 = ssub.s32 %s8, 2
    %s24 = sadd.s32 1, %s17
    %p25 = scmp.ge.s32.totalorder %s24, 1
    %s26 = scalar_select %p25, 0, %s24
    %s27 = sadd.s32 1, %s16
    %s28 = scalar_select %p25, %s27, %s16
    %p29 = scmp.ge.s32.totalorder %s28, 1
    %s30 = scalar_select %p29, 0, %s28
    %s31 = sadd.s32 1, %s15
    %s32 = scalar_select %p29, %s31, %s15
    %p33 = scmp.ge.s32.totalorder %s32, 2
    %s34 = scalar_select %p33, 0, %s32
    %s35 = ssub.s32 %s15, %s34
    %s36 = ssub.s32 %s17, %s26
    %s37 = sor.u32 %s35, %s36
    %p38 = scmp.eq.s32.totalorder %s37, 0
    %s40 = sadd.s32 %s39, 1
    %s41 = scalar_select %p38, %s39, %s40
    %p44 = pneg %p38
    %p45 = scmp.eq.s32.totalorder %s8, 1
    %p46 = por %p44, %p45
    %p47 = scmp.ne.s32.totalorder %s39, %s42
    %p48 = scmp.eq.s32.totalorder %s8, 0
    %p49 = por %p47, %p48
    %p50 = scmp.ne.s32.totalorder %s39, %s42
    %p51 = scmp.eq.s32.totalorder %s13, 1
    %p52 = por %p50, %p51
    %p53 = scmp.ne.s32.totalorder %s42, %s43
    %p54 = scmp.eq.s32.totalorder %s13, 0
    %p55 = por %p53, %p54
    %p56 = scmp.ne.s32.totalorder %s42, %s43
    %p57 = scmp.eq.s32.totalorder %s14, 1
    %p58 = por %p56, %p57
    %p60 = scmp.ne.s32.totalorder %s43, %s59
    %p61 = scmp.eq.s32.totalorder %s14, 0
    %p62 = por %p60, %p61
    %s63 = ssub.s32 %s15, %s34
    %s64 = ssub.s32 %s16, %s30
    %s65 = sor.u32 %s63, %s64
    %s66 = ssub.s32 %s17, %s26
    %s67 = sor.u32 %s65, %s66
    %p68 = scmp.eq.s32.totalorder %s67, 0
    %s70 = sadd.s32 %s69, 1
    %s71 = scalar_select %p68, %s69, %s70
    %p74 = pneg %p68
    %p75 = scmp.eq.s32.totalorder %s8, 1
    %p76 = por %p74, %p75
    %p77 = scmp.ne.s32.totalorder %s69, %s72
    %p78 = scmp.eq.s32.totalorder %s8, 0
    %p79 = por %p77, %p78
    %p80 = scmp.ne.s32.totalorder %s69, %s72
    %p81 = scmp.eq.s32.totalorder %s13, 1
    %p82 = por %p80, %p81
    %p83 = scmp.ne.s32.totalorder %s72, %s73
    %p84 = scmp.eq.s32.totalorder %s13, 0
    %p85 = por %p83, %p84
    %p86 = scmp.ne.s32.totalorder %s72, %s73
    %p87 = scmp.eq.s32.totalorder %s14, 1
    %p88 = por %p86, %p87
    %p90 = scmp.ne.s32.totalorder %s73, %s89
    %p91 = scmp.eq.s32.totalorder %s14, 0
    %p92 = por %p90, %p91
    %s93 = ssub.s32 %s15, %s34
    %s94 = ssub.s32 %s16, %s30
    %s95 = sor.u32 %s93, %s94
    %s96 = ssub.s32 %s17, %s26
    %s97 = sor.u32 %s95, %s96
    %p98 = scmp.eq.s32.totalorder %s97, 0
    %s100 = sadd.s32 %s99, 1
    %s101 = scalar_select %p98, %s99, %s100
    %p104 = pneg %p98
    %p105 = scmp.eq.s32.totalorder %s8, 1
    %p106 = por %p104, %p105
    %p107 = scmp.ne.s32.totalorder %s99, %s102
    %p108 = scmp.eq.s32.totalorder %s8, 0
    %p109 = por %p107, %p108
    %p110 = scmp.ne.s32.totalorder %s99, %s102
    %p111 = scmp.eq.s32.totalorder %s13, 1
    %p112 = por %p110, %p111
    %p113 = scmp.ne.s32.totalorder %s102, %s103
    %p114 = scmp.eq.s32.totalorder %s13, 0
    %p115 = por %p113, %p114
    %p116 = scmp.ne.s32.totalorder %s102, %s103
    %p117 = scmp.eq.s32.totalorder %s14, 1
    %p118 = por %p116, %p117
    %p120 = scmp.ne.s32.totalorder %s103, %s119
    %p121 = scmp.eq.s32.totalorder %s14, 0
    %p122 = por %p120, %p121
    %p123 = scmp.le.s32.totalorder 1, %s8
    %p124 = scmp.lt.s32.totalorder %s8, 3
    %p125 = pnand %p123, %p124
    %p126 = pneg %p125
    // Predicated region
    $region9: #{_dropblock_apply.3} parent=5 // pred_check
      _
    $region10: #{_dropblock_apply.3} parent=5 // pred_check_branch
      %128 = sbr.rel (%p125) target = $region12
    $region11: #{_dropblock_apply.3} parent=5 // pred_region
      %s129 = ssub.s32 %s8, 1
    $region12: #{_dropblock_apply.3} parent=5 // pred_fallthru
      _
    %p130 = scmp.lt.s32.totalorder %s8, 2
    // Predicated region
    $region13: #{_dropblock_apply.3} parent=5 // pred_check
      %p131 = pneg %p130
    $region14: #{_dropblock_apply.3} parent=5 // pred_check_branch
      %133 = sbr.rel (%p131) target = $region16
    $region15: #{_dropblock_apply.3} parent=5 // pred_region
      // Predicated region
      $region17: #{_dropblock_apply.3} parent=15 // pred_check
        %p134 = pneg %p49
      $region18: #{_dropblock_apply.3} parent=15 // pred_check_branch
        %136 = sbr.rel (%p134) target = $region20
      $region19: #{_dropblock_apply.3} parent=15 // pred_region
        %s137 = smul.u32 2, %s17
        %p138 = scmp.lt.s32.totalorder %s15, 1
        %s139 = scalar_select %p138, %s15, 1
        %p140 = scmp.lt.s32.totalorder %s137, 1
        %s141 = scalar_select %p140, %s137, 1
        %s142 = smul.addr %s139, 2
        %s143 = sadd.s32 %s141, %s142
        %s144 = scalar_lea.vmem %s0, %s143
        %s145 = smul.u32 2, %s17
      $region20: #{_dropblock_apply.3} parent=15 // pred_fallthru
        _
      // Predicated region
      $region21: #{_dropblock_apply.3} parent=15 // pred_check
        %p146 = pneg %p79
      $region22: #{_dropblock_apply.3} parent=15 // pred_check_branch
        %148 = sbr.rel (%p146) target = $region24
      $region23: #{_dropblock_apply.3} parent=15 // pred_region
        %s149 = smul.u32 2, %s17
        %p150 = scmp.lt.s32.totalorder %s15, 1
        %s151 = scalar_select %p150, %s15, 1
        %p152 = scmp.lt.s32.totalorder %s16, 0
        %s153 = scalar_select %p152, %s16, 0
        %p154 = scmp.lt.s32.totalorder %s149, 1
        %s155 = scalar_select %p154, %s149, 1
        %s156 = smul.addr %s153, 2
        %s157 = sadd.s32 %s155, %s156
        %s158 = smul.addr %s151, 2
        %s159 = sadd.s32 %s157, %s158
        %s160 = smul.addr %s159, 4
        %s161 = scalar_lea.vmem %s1, %s160
        %s162 = smul.u32 2, %s17
      $region24: #{_dropblock_apply.3} parent=15 // pred_fallthru
        _
    $region16: #{_dropblock_apply.3} parent=5 // pred_fallthru
      _
    %p163 = scmp.le.s32.totalorder 1, %s8
    %p164 = scmp.lt.s32.totalorder %s8, 3
    %p165 = pnand %p163, %p164
    %p166 = pneg %p165
    // Predicated region
    $region25: #{_dropblock_apply.3} parent=5 // pred_check
      _
    $region26: #{_dropblock_apply.3} parent=5 // pred_check_branch
      %168 = sbr.rel (%p165) target = $region28
    $region27: #{_dropblock_apply.3} parent=5 // pred_region
      %s169 = ssub.s32 %s8, 1
      %s170 = smul.u32 2, %s20
      %p171 = scmp.lt.s32.totalorder %s18, 1
      %s172 = scalar_select %p171, %s18, 1
      %p173 = scmp.lt.s32.totalorder %s170, 1
      %s174 = scalar_select %p173, %s170, 1
      %s175 = smul.addr %s172, 2
      %s176 = sadd.s32 %s174, %s175
      %s177 = scalar_lea.vmem %s0, %s176
      %p178 = pneg %p55
      %p179 = pneg %p52
      %s180 = smul.u32 2, %s20
      %p181 = scmp.lt.s32.totalorder %s18, 1
      %s182 = scalar_select %p181, %s18, 1
      %p183 = scmp.lt.s32.totalorder %s19, 0
      %s184 = scalar_select %p183, %s19, 0
      %p185 = scmp.lt.s32.totalorder %s180, 1
      %s186 = scalar_select %p185, %s180, 1
      %s187 = smul.addr %s184, 2
      %s188 = sadd.s32 %s186, %s187
      %s189 = smul.addr %s182, 2
      %s190 = sadd.s32 %s188, %s189
      %s191 = smul.addr %s190, 4
      %s192 = scalar_lea.vmem %s1, %s191
      %p193 = pneg %p85
      %p194 = pneg %p82
      %p195 = pneg %p115
      %p196 = pneg %p112
      %s197 = smul.u32 2, %s20
      %p198 = scmp.lt.s32.totalorder %s18, 1
      %s199 = scalar_select %p198, %s18, 1
      %p200 = scmp.lt.s32.totalorder %s19, 0
      %s201 = scalar_select %p200, %s19, 0
      %p202 = scmp.lt.s32.totalorder %s197, 1
      %s203 = scalar_select %p202, %s197, 1
      %s204 = smul.addr %s201, 2
      %s205 = sadd.s32 %s203, %s204
      %s206 = smul.addr %s199, 2
      %s207 = sadd.s32 %s205, %s206
      %s208 = smul.addr %s207, 4
      %s209 = scalar_lea.vmem %s2, %s208
      %s210 = smul.u32 2, %s20
      %p211 = scmp.lt.s32.totalorder %s18, 1
      %s212 = scalar_select %p211, %s18, 1
      %p213 = scmp.lt.s32.totalorder %s210, 1
      %s214 = scalar_select %p213, %s210, 1
      %s215 = smul.addr %s212, 2
      %s216 = sadd.s32 %s214, %s215
      %s217 = scalar_lea.vmem %s0, %s216
      %s218 = smul.u32 2, %s20
      %s219 = smul.u32 2, %s20
      %p220 = scmp.lt.s32.totalorder %s18, 1
      %s221 = scalar_select %p220, %s18, 1
      %p222 = scmp.lt.s32.totalorder %s19, 0
      %s223 = scalar_select %p222, %s19, 0
      %p224 = scmp.lt.s32.totalorder %s219, 1
      %s225 = scalar_select %p224, %s219, 1
      %s226 = smul.addr %s223, 2
      %s227 = sadd.s32 %s225, %s226
      %s228 = smul.addr %s221, 2
      %s229 = sadd.s32 %s227, %s228
      %s230 = smul.addr %s229, 4
      %s231 = scalar_lea.vmem %s1, %s230
      %s232 = smul.u32 2, %s20
      %s233 = smul.u32 2, %s20
      %p234 = scmp.lt.s32.totalorder %s18, 1
      %s235 = scalar_select %p234, %s18, 1
      %p236 = scmp.lt.s32.totalorder %s19, 0
      %s237 = scalar_select %p236, %s19, 0
      %p238 = scmp.lt.s32.totalorder %s233, 1
      %s239 = scalar_select %p238, %s233, 1
      %s240 = smul.addr %s237, 2
      %s241 = sadd.s32 %s239, %s240
      %s242 = smul.addr %s235, 2
      %s243 = sadd.s32 %s241, %s242
      %s244 = smul.addr %s243, 4
      %s245 = scalar_lea.vmem %s2, %s244
      %s246 = smul.u32 2, %s20
      %v247 = vld [vmem:[%s231] sm:$0xff]
      %v248 = vld [vmem:[%s217] sm:$0x3]
      %v250 = vlaneseq
      %v251 = vshrl.u32 %v250, 7
      %v252 = vsub.s32 0, %v251
      %v253 = vrot.slane %v248, %v252
      %v254 = vlaneseq
      %v255 = vshrl.u32 %v254, 7
      %v256 = vsub.s32 1, %v255
      %v257 = vrot.slane %v248, %v256
      %v258 = vcombine.low %v253, %v257
      %v260 = vmul.f32 %v247, %v258
      %261 = vst [vmem:[%s245] sm:$0xff] %v260
      %s262 = smul.u32 2, %s20
      %p263 = scmp.lt.s32.totalorder %s18, 1
      %s264 = scalar_select %p263, %s18, 1
      %p265 = scmp.lt.s32.totalorder %s19, 0
      %s266 = scalar_select %p265, %s19, 0
      %p267 = scmp.lt.s32.totalorder %s262, 1
      %s268 = scalar_select %p267, %s262, 1
      %s269 = smul.addr %s266, 2
      %s270 = sadd.s32 %s268, %s269
      %s271 = smul.addr %s264, 2
      %s272 = sadd.s32 %s270, %s271
      %s273 = smul.addr %s272, 4
      %s274 = scalar_lea.vmem %s2, %s273
      // Predicated region
      $region29: #{_dropblock_apply.3} parent=27 // pred_check
        %p275 = pneg %p112
      $region30: #{_dropblock_apply.3} parent=27 // pred_check_branch
        %277 = sbr.rel (%p275) target = $region32
      $region31: #{_dropblock_apply.3} parent=27 // pred_region
        %s278 = smul.u32 2, %s20
      $region32: #{_dropblock_apply.3} parent=27 // pred_fallthru
        _
    $region28: #{_dropblock_apply.3} parent=5 // pred_fallthru
      _
    %p279 = scmp.le.s32.totalorder 2, %s8
    // Predicated region
    $region33: #{_dropblock_apply.3} parent=5 // pred_check
      %p280 = pneg %p279
    $region34: #{_dropblock_apply.3} parent=5 // pred_check_branch
      %282 = sbr.rel (%p280) target = $region36
    $region35: #{_dropblock_apply.3} parent=5 // pred_region
      %s283 = ssub.s32 %s8, 2
      // Predicated region
      $region37: #{_dropblock_apply.3} parent=35 // pred_check
        %p284 = pneg %p118
      $region38: #{_dropblock_apply.3} parent=35 // pred_check_branch
        %286 = sbr.rel (%p284) target = $region40
      $region39: #{_dropblock_apply.3} parent=35 // pred_region
        %s287 = smul.u32 2, %s23
        %p288 = scmp.lt.s32.totalorder %s21, 1
        %s289 = scalar_select %p288, %s21, 1
        %p290 = scmp.lt.s32.totalorder %s22, 0
        %s291 = scalar_select %p290, %s22, 0
        %p292 = scmp.lt.s32.totalorder %s287, 1
        %s293 = scalar_select %p292, %s287, 1
        %s294 = smul.addr %s291, 2
        %s295 = sadd.s32 %s293, %s294
        %s296 = smul.addr %s289, 2
        %s297 = sadd.s32 %s295, %s296
        %s298 = smul.addr %s297, 4
        %s299 = scalar_lea.vmem %s2, %s298
      $region40: #{_dropblock_apply.3} parent=35 // pred_fallthru
        _
    $region36: #{_dropblock_apply.3} parent=5 // pred_fallthru
      _
  $region6: #{_dropblock_apply.3} parent=0 // loop_footer
    %s12 = sadd.s32 1, %s8
  $region7: #{_dropblock_apply.3} parent=0 // loop_footer_branch
    %7 = sbr.rel target = $region3
  $region8: #{_dropblock_apply.3} parent=0 // loop_exit
    _

// kernel: _dropblock_apply.2
$region0: #{_dropblock_apply.2}
  #allocation0 [shape = 'u32[]', space=smem, size = 0x4, offset = 0x4, fixed_abs, tag = 'smem constant byte address 0x4 - core index']
  #allocation1 [shape = 'u32[144,128]{1,0:T(1,128)}', space=vmem, size = 0x12000, scoped, tag = 'internal scratch']
  #allocation2 [shape = 'f32[1]{0:T(128)S(6)}', space=smem, size = 0x200, scoped, tag = 'scoped memory for _dropblock_apply.2']
  %s0 = inlined_call_operand.<no memory space> [shape: f32[1], index: 0, kind: input, shape index: {}]
  %s1 = inlined_call_operand.vmem [shape: f32[2,16,16], index: 1, kind: input, shape index: {}]
  %s2 = inlined_call_operand.vmem [shape: f32[16,16], index: 2, kind: input, shape index: {}]
  %s3 = inlined_call_operand.vmem [shape: f32[16,16], index: 3, kind: input, shape index: {}]
  %s4 = inlined_call_operand.vmem [shape: f32[2,16,16], index: 4, kind: output, shape index: {}]
  %s5 = sld [smem:[#allocation0]]
  $region26: #{_dropblock_apply.2} parent=0
    _
  %s7 = ssub.s32 1, %s5
  %s8 = scalar_select 0, %s7, %s5
  %9 = sst [smem:[#allocation2]] %s0
  // Predicated region
  $region2: #{_dropblock_apply.2} parent=0 // pred_check
    _
  $region3: #{_dropblock_apply.2} parent=0 // pred_check_branch
    %11 = sbr.rel (0) target = $region5
  $region4: #{_dropblock_apply.2} parent=0 // pred_region
    _
  $region5: #{_dropblock_apply.2} parent=0 // pred_fallthru
    _
  // Predicated region
  $region6: #{_dropblock_apply.2} parent=0 // pred_check
    _
  $region7: #{_dropblock_apply.2} parent=0 // pred_check_branch
    %13 = sbr.rel (0) target = $region9
  $region8: #{_dropblock_apply.2} parent=0 // pred_region
    _
  $region9: #{_dropblock_apply.2} parent=0 // pred_fallthru
    _
  // Predicated region
  $region10: #{_dropblock_apply.2} parent=0 // pred_check
    _
  $region11: #{_dropblock_apply.2} parent=0 // pred_check_branch
    %15 = sbr.rel (0) target = $region13
  $region12: #{_dropblock_apply.2} parent=0 // pred_region
    _
  $region13: #{_dropblock_apply.2} parent=0 // pred_fallthru
    _
  // Predicated region
  $region14: #{_dropblock_apply.2} parent=0 // pred_check
    _
  $region15: #{_dropblock_apply.2} parent=0 // pred_check_branch
    %17 = sbr.rel (0) target = $region17
  $region16: #{_dropblock_apply.2} parent=0 // pred_region
    _
  $region17: #{_dropblock_apply.2} parent=0 // pred_fallthru
    _
  %s18 = sld [smem:[#allocation2]]
  %v19 = vld [vmem:[%s1] sm:$0xff]
  %v20 = vld [vmem:[%s1 + $0x8] sm:$0xff]
  %v21 = vld [vmem:[%s1 + $0x10] sm:$0xff]
  %v22 = vld [vmem:[%s1 + $0x18] sm:$0xff]
  %v23 = vstv %s18
  %vm24 = vcmp.lt.f32.partialorder %v19, %v23
  %vm25 = vcmp.lt.f32.partialorder %v20, %v23
  %vm26 = vcmp.lt.f32.partialorder %v21, %v23
  %vm27 = vcmp.lt.f32.partialorder %v22, %v23
  %v28 = vsel %vm24, 1, 0
  %v29 = vsel %vm25, 1, 0
  %v30 = vsel %vm26, 1, 0
  %v31 = vsel %vm27, 1, 0
  %v32 = vcvt.s32.f32 %v28
  %v33 = vcvt.s32.f32 %v29
  %v34 = vcvt.s32.f32 %v30
  %v35 = vcvt.s32.f32 %v31
  %v36 = vlaneseq
  %v37 = vshrl.u32 %v36, 7
  %v38 = vadd.s32 %v37, 8
  %v39 = vlaneseq
  %v40 = vand.u32 %v39, 127
  %vm41 = vcmp.ge.s32.totalorder %v37, 1
  %vm42 = vcmp.ge.s32.totalorder %v38, 1
  %vm43 = vcmp.le.s32.totalorder %v37, 14
  %vm44 = vcmp.le.s32.totalorder %v38, 14
  %vm45 = vmand %vm41, %vm43
  %vm46 = vmand %vm42, %vm44
  %vm47 = vcmp.ge.s32.totalorder %v40, 1
  %vm48 = vmand %vm45, %vm47
  %vm49 = vmand %vm46, %vm47
  %vm50 = vcmp.le.s32.totalorder %v40, 14
  %vm51 = vmand %vm48, %vm50
  %vm52 = vmand %vm49, %vm50
  %v53 = vsel %vm51, %v32, 0.0
  %v54 = vsel %vm52, %v33, 0.0
  %v55 = vsel %vm51, %v34, 0.0
  %v56 = vsel %vm52, %v35, 0.0
  %v57 = vld [vmem:[%s2] sm:$0xff]
  %v58 = vld [vmem:[%s2 + $0x8] sm:$0xff]
  %v59 = vld [vmem:[%s3] sm:$0xff]
  %v60 = vld [vmem:[%s3 + $0x8] sm:$0xff]
  %vm61 = vcmask 130048
  %v63 = vsel %vm61, %v57, 0
  %v66 = vsel %vm61, %v58, 0
  %68 = vmatprep.subr.mxu0 0.0
  %69 = vmatpush1.msra.mxu0 0.0
  %70 = vmatprep.subr.mxu0 0.0
  %71 = vmatpush1.msra.mxu0 0.0
  %72 = vmatprep.subr.mxu0 0.0
  %73 = vmatpush1.msra.mxu0 0.0
  %74 = vmatprep.subr.mxu0 0.0
  %75 = vmatpush1.msra.mxu0 0.0
  %76 = vmatprep.subr.mxu0 0.0
  %77 = vmatpush1.msra.mxu0 0.0
  %78 = vmatprep.subr.mxu0 0.0
  %79 = vmatpush1.msra.mxu0 0.0
  %80 = vmatprep.subr.mxu0 0.0
  %81 = vmatpush1.msra.mxu0 0.0
  %82 = vmatprep.subr.mxu0 0.0
  %83 = vmatpush1.msra.mxu0 0.0
  %84 = vmatprep.subr.mxu0 0.0
  %85 = vmatpush1.msra.mxu0 0.0
  %86 = vmatprep.subr.mxu0 0.0
  %87 = vmatpush1.msra.mxu0 0.0
  %88 = vmatprep.subr.mxu0 0.0
  %89 = vmatpush1.msra.mxu0 0.0
  %90 = vmatprep.subr.mxu0 0.0
  %91 = vmatpush1.msra.mxu0 0.0
  %92 = vmatprep.subr.mxu0 0.0
  %93 = vmatpush1.msra.mxu0 0.0
  %94 = vmatprep.subr.mxu0 0.0
  %95 = vmatpush1.msra.mxu0 0.0
  %96 = vmatprep.subr.mxu0 0.0
  %97 = vmatpush1.msra.mxu0 %v54
  %98 = vmatprep.subr.mxu0 0.0
  %99 = vmatpush1.msra.mxu0 %v53
  %100 = vmatprep.subr.mxu0 0.0
  %101 = vmatpush2.msra.mxu0 0.0
  %102 = vmatprep.subr.mxu0 0.0
  %103 = vmatpush2.msra.mxu0 0.0
  %104 = vmatprep.subr.mxu0 0.0
  %105 = vmatpush2.msra.mxu0 0.0
  %106 = vmatprep.subr.mxu0 0.0
  %107 = vmatpush2.msra.mxu0 0.0
  %108 = vmatprep.subr.mxu0 0.0
  %109 = vmatpush2.msra.mxu0 0.0
  %110 = vmatprep.subr.mxu0 0.0
  %111 = vmatpush2.msra.mxu0 0.0
  %112 = vmatprep.subr.mxu0 0.0
  %113 = vmatpush2.msra.mxu0 0.0
  %114 = vmatprep.subr.mxu0 0.0
  %115 = vmatpush2.msra.mxu0 0.0
  %116 = vmatprep.subr.mxu0 0.0
  %117 = vmatpush2.msra.mxu0 0.0
  %118 = vmatprep.subr.mxu0 0.0
  %119 = vmatpush2.msra.mxu0 0.0
  %120 = vmatprep.subr.mxu0 0.0
  %121 = vmatpush2.msra.mxu0 0.0
  %122 = vmatprep.subr.mxu0 0.0
  %123 = vmatpush2.msra.mxu0 0.0
  %124 = vmatprep.subr.mxu0 0.0
  %125 = vmatpush2.msra.mxu0 0.0
  %126 = vmatprep.subr.mxu0 0.0
  %127 = vmatpush2.msra.mxu0 0.0
  %128 = vmatprep.subr.mxu0 0.0
  %129 = vmatpush2.msra.mxu0 0.0
  %130 = vmatprep.subr.mxu0 0.0
  %131 = vmatpush2.msra.mxu0 0.0
  %132 = vmatprep.mubr.f32.mxu0 0.0
  %133 = vmatmul.mubr.f32.gmra.mxu0 %v63
  %v134 = vpop.f32.mrf.mxu0
  %v135 = vadd.f32 0.0, %v134
  %v136 = vpop.f32.mrf.mxu0
  %137 = vmatprep.mubr.f32.mxu0 0.0
  %138 = vmatmul.mubr.f32.gmra.mxu0 %v66
  %v139 = vpop.f32.mrf.mxu0
  %v140 = vadd.f32 0.0, %v139
  %v141 = vpop.f32.mrf.mxu0
  %142 = vdwg.mxu0
  %143 = vmatprep.subr.mxu0 0.0
  %144 = vmatpush1.msra.mxu0 0.0
  %145 = vmatprep.subr.mxu0 0.0
  %146 = vmatpush1.msra.mxu0 0.0
  %147 = vmatprep.subr.mxu0 0.0
  %148 = vmatpush1.msra.mxu0 0.0
  %149 = vmatprep.subr.mxu0 0.0
  %150 = vmatpush1.msra.mxu0 0.0
  %151 = vmatprep.subr.mxu0 0.0
  %152 = vmatpush1.msra.mxu0 0.0
  %153 = vmatprep.subr.mxu0 0.0
  %154 = vmatpush1.msra.mxu0 0.0
  %155 = vmatprep.subr.mxu0 0.0
  %156 = vmatpush1.msra.mxu0 0.0
  %157 = vmatprep.subr.mxu0 0.0
  %158 = vmatpush1.msra.mxu0 0.0
  %159 = vmatprep.subr.mxu0 0.0
  %160 = vmatpush1.msra.mxu0 0.0
  %161 = vmatprep.subr.mxu0 0.0
  %162 = vmatpush1.msra.mxu0 0.0
  %163 = vmatprep.subr.mxu0 0.0
  %164 = vmatpush1.msra.mxu0 0.0
  %165 = vmatprep.subr.mxu0 0.0
  %166 = vmatpush1.msra.mxu0 0.0
  %167 = vmatprep.subr.mxu0 0.0
  %168 = vmatpush1.msra.mxu0 0.0
  %169 = vmatprep.subr.mxu0 0.0
  %170 = vmatpush1.msra.mxu0 0.0
  %171 = vmatprep.subr.mxu0 0.0
  %172 = vmatpush1.msra.mxu0 %v56
  %173 = vmatprep.subr.mxu0 0.0
  %174 = vmatpush1.msra.mxu0 %v55
  %175 = vmatprep.subr.mxu0 0.0
  %176 = vmatpush2.msra.mxu0 0.0
  %177 = vmatprep.subr.mxu0 0.0
  %178 = vmatpush2.msra.mxu0 0.0
  %179 = vmatprep.subr.mxu0 0.0
  %180 = vmatpush2.msra.mxu0 0.0
  %181 = vmatprep.subr.mxu0 0.0
  %182 = vmatpush2.msra.mxu0 0.0
  %183 = vmatprep.subr.mxu0 0.0
  %184 = vmatpush2.msra.mxu0 0.0
  %185 = vmatprep.subr.mxu0 0.0
  %186 = vmatpush2.msra.mxu0 0.0
  %187 = vmatprep.subr.mxu0 0.0
  %188 = vmatpush2.msra.mxu0 0.0
  %189 = vmatprep.subr.mxu0 0.0
  %190 = vmatpush2.msra.mxu0 0.0
  %191 = vmatprep.subr.mxu0 0.0
  %192 = vmatpush2.msra.mxu0 0.0
  %193 = vmatprep.subr.mxu0 0.0
  %194 = vmatpush2.msra.mxu0 0.0
  %195 = vmatprep.subr.mxu0 0.0
  %196 = vmatpush2.msra.mxu0 0.0
  %197 = vmatprep.subr.mxu0 0.0
  %198 = vmatpush2.msra.mxu0 0.0
  %199 = vmatprep.subr.mxu0 0.0
  %200 = vmatpush2.msra.mxu0 0.0
  %201 = vmatprep.subr.mxu0 0.0
  %202 = vmatpush2.msra.mxu0 0.0
  %203 = vmatprep.subr.mxu0 0.0
  %204 = vmatpush2.msra.mxu0 0.0
  %205 = vmatprep.subr.mxu0 0.0
  %206 = vmatpush2.msra.mxu0 0.0
  %207 = vmatprep.mubr.f32.mxu0 0.0
  %208 = vmatmul.mubr.f32.gmra.mxu0 %v63
  %v209 = vpop.f32.mrf.mxu0
  %v210 = vadd.f32 0.0, %v209
  %v211 = vpop.f32.mrf.mxu0
  %212 = vmatprep.mubr.f32.mxu0 0.0
  %213 = vmatmul.mubr.f32.gmra.mxu0 %v66
  %v214 = vpop.f32.mrf.mxu0
  %v215 = vadd.f32 0.0, %v214
  %v216 = vpop.f32.mrf.mxu0
  %217 = vdwg.mxu0
  %v219 = vsel %vm61, %v135, 0
  %v222 = vsel %vm61, %v140, 0
  %224 = vmatprep.subr.mxu0 0.0
  %225 = vmatpush1.msra.mxu0 0.0
  %226 = vmatprep.subr.mxu0 0.0
  %227 = vmatpush1.msra.mxu0 0.0
  %228 = vmatprep.subr.mxu0 0.0
  %229 = vmatpush1.msra.mxu0 0.0
  %230 = vmatprep.subr.mxu0 0.0
  %231 = vmatpush1.msra.mxu0 0.0
  %232 = vmatprep.subr.mxu0 0.0
  %233 = vmatpush1.msra.mxu0 0.0
  %234 = vmatprep.subr.mxu0 0.0
  %235 = vmatpush1.msra.mxu0 0.0
  %236 = vmatprep.subr.mxu0 0.0
  %237 = vmatpush1.msra.mxu0 0.0
  %238 = vmatprep.subr.mxu0 0.0
  %239 = vmatpush1.msra.mxu0 0.0
  %240 = vmatprep.subr.mxu0 0.0
  %241 = vmatpush1.msra.mxu0 0.0
  %242 = vmatprep.subr.mxu0 0.0
  %243 = vmatpush1.msra.mxu0 0.0
  %244 = vmatprep.subr.mxu0 0.0
  %245 = vmatpush1.msra.mxu0 0.0
  %246 = vmatprep.subr.mxu0 0.0
  %247 = vmatpush1.msra.mxu0 0.0
  %248 = vmatprep.subr.mxu0 0.0
  %249 = vmatpush1.msra.mxu0 0.0
  %250 = vmatprep.subr.mxu0 0.0
  %251 = vmatpush1.msra.mxu0 0.0
  %252 = vmatprep.subr.mxu0 0.0
  %253 = vmatpush1.msra.mxu0 %v60
  %254 = vmatprep.subr.mxu0 0.0
  %255 = vmatpush1.msra.mxu0 %v59
  %256 = vmatprep.subr.mxu0 0.0
  %257 = vmatpush2.msra.mxu0 0.0
  %258 = vmatprep.subr.mxu0 0.0
  %259 = vmatpush2.msra.mxu0 0.0
  %260 = vmatprep.subr.mxu0 0.0
  %261 = vmatpush2.msra.mxu0 0.0
  %262 = vmatprep.subr.mxu0 0.0
  %263 = vmatpush2.msra.mxu0 0.0
  %264 = vmatprep.subr.mxu0 0.0
  %265 = vmatpush2.msra.mxu0 0.0
  %266 = vmatprep.subr.mxu0 0.0
  %267 = vmatpush2.msra.mxu0 0.0
  %268 = vmatprep.subr.mxu0 0.0
  %269 = vmatpush2.msra.mxu0 0.0
  %270 = vmatprep.subr.mxu0 0.0
  %271 = vmatpush2.msra.mxu0 0.0
  %272 = vmatprep.subr.mxu0 0.0
  %273 = vmatpush2.msra.mxu0 0.0
  %274 = vmatprep.subr.mxu0 0.0
  %275 = vmatpush2.msra.mxu0 0.0
  %276 = vmatprep.subr.mxu0 0.0
  %277 = vmatpush2.msra.mxu0 0.0
  %278 = vmatprep.subr.mxu0 0.0
  %279 = vmatpush2.msra.mxu0 0.0
  %280 = vmatprep.subr.mxu0 0.0
  %281 = vmatpush2.msra.mxu0 0.0
  %282 = vmatprep.subr.mxu0 0.0
  %283 = vmatpush2.msra.mxu0 0.0
  %284 = vmatprep.subr.mxu0 0.0
  %285 = vmatpush2.msra.mxu0 0.0
  %286 = vmatprep.subr.mxu0 0.0
  %287 = vmatpush2.msra.mxu0 0.0
  %288 = vmatprep.mubr.f32.mxu0 0.0
  %289 = vmatmul.mubr.f32.gmra.mxu0 %v219
  %v290 = vpop.f32.mrf.mxu0
  %v291 = vadd.f32 0.0, %v290
  %v292 = vpop.f32.mrf.mxu0
  %293 = vmatprep.mubr.f32.mxu0 0.0
  %294 = vmatmul.mubr.f32.gmra.mxu0 %v222
  %v295 = vpop.f32.mrf.mxu0
  %v296 = vadd.f32 0.0, %v295
  %v297 = vpop.f32.mrf.mxu0
  %298 = vdwg.mxu0
  %v300 = vsel %vm61, %v210, 0
  %v303 = vsel %vm61, %v215, 0
  %305 = vmatprep.subr.mxu0 0.0
  %306 = vmatpush1.msra.mxu0 0.0
  %307 = vmatprep.subr.mxu0 0.0
  %308 = vmatpush1.msra.mxu0 0.0
  %309 = vmatprep.subr.mxu0 0.0
  %310 = vmatpush1.msra.mxu0 0.0
  %311 = vmatprep.subr.mxu0 0.0
  %312 = vmatpush1.msra.mxu0 0.0
  %313 = vmatprep.subr.mxu0 0.0
  %314 = vmatpush1.msra.mxu0 0.0
  %315 = vmatprep.subr.mxu0 0.0
  %316 = vmatpush1.msra.mxu0 0.0
  %317 = vmatprep.subr.mxu0 0.0
  %318 = vmatpush1.msra.mxu0 0.0
  %319 = vmatprep.subr.mxu0 0.0
  %320 = vmatpush1.msra.mxu0 0.0
  %321 = vmatprep.subr.mxu0 0.0
  %322 = vmatpush1.msra.mxu0 0.0
  %323 = vmatprep.subr.mxu0 0.0
  %324 = vmatpush1.msra.mxu0 0.0
  %325 = vmatprep.subr.mxu0 0.0
  %326 = vmatpush1.msra.mxu0 0.0
  %327 = vmatprep.subr.mxu0 0.0
  %328 = vmatpush1.msra.mxu0 0.0
  %329 = vmatprep.subr.mxu0 0.0
  %330 = vmatpush1.msra.mxu0 0.0
  %331 = vmatprep.subr.mxu0 0.0
  %332 = vmatpush1.msra.mxu0 0.0
  %333 = vmatprep.subr.mxu0 0.0
  %334 = vmatpush1.msra.mxu0 %v60
  %335 = vmatprep.subr.mxu0 0.0
  %336 = vmatpush1.msra.mxu0 %v59
  %337 = vmatprep.subr.mxu0 0.0
  %338 = vmatpush2.msra.mxu0 0.0
  %339 = vmatprep.subr.mxu0 0.0
  %340 = vmatpush2.msra.mxu0 0.0
  %341 = vmatprep.subr.mxu0 0.0
  %342 = vmatpush2.msra.mxu0 0.0
  %343 = vmatprep.subr.mxu0 0.0
  %344 = vmatpush2.msra.mxu0 0.0
  %345 = vmatprep.subr.mxu0 0.0
  %346 = vmatpush2.msra.mxu0 0.0
  %347 = vmatprep.subr.mxu0 0.0
  %348 = vmatpush2.msra.mxu0 0.0
  %349 = vmatprep.subr.mxu0 0.0
  %350 = vmatpush2.msra.mxu0 0.0
  %351 = vmatprep.subr.mxu0 0.0
  %352 = vmatpush2.msra.mxu0 0.0
  %353 = vmatprep.subr.mxu0 0.0
  %354 = vmatpush2.msra.mxu0 0.0
  %355 = vmatprep.subr.mxu0 0.0
  %356 = vmatpush2.msra.mxu0 0.0
  %357 = vmatprep.subr.mxu0 0.0
  %358 = vmatpush2.msra.mxu0 0.0
  %359 = vmatprep.subr.mxu0 0.0
  %360 = vmatpush2.msra.mxu0 0.0
  %361 = vmatprep.subr.mxu0 0.0
  %362 = vmatpush2.msra.mxu0 0.0
  %363 = vmatprep.subr.mxu0 0.0
  %364 = vmatpush2.msra.mxu0 0.0
  %365 = vmatprep.subr.mxu0 0.0
  %366 = vmatpush2.msra.mxu0 0.0
  %367 = vmatprep.subr.mxu0 0.0
  %368 = vmatpush2.msra.mxu0 0.0
  %369 = vmatprep.mubr.f32.mxu0 0.0
  %370 = vmatmul.mubr.f32.gmra.mxu0 %v300
  %v371 = vpop.f32.mrf.mxu0
  %v372 = vadd.f32 0.0, %v371
  %v373 = vpop.f32.mrf.mxu0
  %374 = vmatprep.mubr.f32.mxu0 0.0
  %375 = vmatmul.mubr.f32.gmra.mxu0 %v303
  %v376 = vpop.f32.mrf.mxu0
  %v377 = vadd.f32 0.0, %v376
  %v378 = vpop.f32.mrf.mxu0
  %379 = vdwg.mxu0
  %vm380 = vcmp.lt.f32.partialorder %v291, 0.5
  %vm381 = vcmp.lt.f32.partialorder %v296, 0.5
  %vm382 = vcmp.lt.f32.partialorder %v372, 0.5
  %vm383 = vcmp.lt.f32.partialorder %v377, 0.5
  %v384 = vsel %vm380, 1, 0
  %v385 = vsel %vm381, 1, 0
  %v386 = vsel %vm382, 1, 0
  %v387 = vsel %vm383, 1, 0
  %v388 = vcvt.s32.f32 %v384
  %v389 = vcvt.s32.f32 %v385
  %v390 = vcvt.s32.f32 %v386
  %v391 = vcvt.s32.f32 %v387
  %v392 = vsel %vm61, %v388, 0.0
  %v393 = vsel %vm61, %v389, 0.0
  %v394 = vadd.f32 %v392, %v393
  %v395 = vsel %vm61, %v390, 0.0
  %v396 = vadd.f32 %v394, %v395
  %v397 = vsel %vm61, %v391, 0.0
  %v398 = vadd.f32 %v396, %v397
  %399 = vadd.xlane.f32.xlu0 %v398
  %v400 = vpop.xlane.xlu0 %399
  %v401 = vrot.slane %v400, 4
  %v402 = vadd.f32 %v400, %v401
  %v403 = vrot.slane %v402, 2
  %v404 = vadd.f32 %v402, %v403
  %v405 = vrot.slane %v404, 1
  %v406 = vadd.f32 %v404, %v405
  %s407 = vtos %v406
  %s408 = smax.f32 %s407, 1.0
  %v409 = vstv %s408
  %v410 = vrcp.pop %v409
  %s411 = vtos %v410
  %s412 = smul.f32 512.0, %s411
  %v413 = vstv %s412
  %v414 = vmul.f32 %v388, %v413
  %v415 = vmul.f32 %v389, %v413
  %v416 = vmul.f32 %v390, %v413
  %v417 = vmul.f32 %v391, %v413
  %418 = vst.msk [vmem:[%s4] sm:$0xff] %vm61, %v414
  %419 = vst.msk [vmem:[%s4 + $0x8] sm:$0xff] %vm61, %v415
  %420 = vst.msk [vmem:[%s4 + $0x10] sm:$0xff] %vm61, %v416
  %421 = vst.msk [vmem:[%s4 + $0x18] sm:$0xff] %vm61, %v417
  // Predicated region
  $region18: #{_dropblock_apply.2} parent=0 // pred_check
    _
  $region19: #{_dropblock_apply.2} parent=0 // pred_check_branch
    %423 = sbr.rel (0) target = $region21
  $region20: #{_dropblock_apply.2} parent=0 // pred_region
    _
  $region21: #{_dropblock_apply.2} parent=0 // pred_fallthru
    _
  // Predicated region
  $region22: #{_dropblock_apply.2} parent=0 // pred_check
    _
  $region23: #{_dropblock_apply.2} parent=0 // pred_check_branch
    %425 = sbr.rel (0) target = $region25
  $region24: #{_dropblock_apply.2} parent=0 // pred_region
    _
  $region25: #{_dropblock_apply.2} parent=0 // pred_fallthru
    _

</llo_original>
